<compile_context>
chip_gen: v6e
topology: v6e:2x2x1
jax: 0.10.0
libtpu: 0.0.40
codegen_flags: <defaults>
</compile_context>

<pallas_src>
import jax
import jax.numpy as jnp
from jax.experimental import pallas as pl
from jax.experimental.pallas import tpu as pltpu


def _round_up(x, m):
    return (x + m - 1) // m * m


def _round_down(x, m):
    return (x // m) * m


def _cdiv(a, b):
    return -(-a // b)


def adapter_kernel(h_ref, wd_ref, bd_ref, wu_ref, bu_ref, out_ref):
    # h_ref:  (tm, F)  tile of org_module's output, f32 or bf16
    # wd_ref: (F, A)   down_proj weight [in, out]
    # bd_ref: (1, A)   down_proj bias (f32)
    # wu_ref: (A, F)   up_proj weight [in, out]
    # bu_ref: (1, F)   up_proj bias (f32)
    #
    # INVARIANT: every op here is row-independent.  The grid runs over the
    # unpadded M with cdiv, so the last block may contain garbage tail rows
    # (out-of-range reads); Pallas masks the corresponding stores.  Do NOT add
    # any cross-row reduction without reinstating explicit padding/masking.
    h = h_ref[...]

    # down_proj: (tm, F) @ (F, A) -> (tm, A), f32 accumulation on the MXU.
    low = jnp.dot(h, wd_ref[...], preferred_element_type=jnp.float32) + bd_ref[...]

    # SiLU: x * sigmoid(x); sigmoid lowers to the EUP (logistic/exp) path.
    act = low * jax.nn.sigmoid(low)

    # up_proj: (tm, A) @ (A, F) -> (tm, F), f32 accumulation.
    delta = jnp.dot(act.astype(wu_ref.dtype), wu_ref[...],
                    preferred_element_type=jnp.float32) + bu_ref[...]

    # Residual: convert h only here (no f32 copy of the whole tile kept live
    # across both matmuls), cast only at the store.
    out_ref[...] = (h_ref[...].astype(jnp.float32) + delta).astype(out_ref.dtype)


def adapter_forward(h, w_down, b_down, w_up, b_up, *, tm=1024):
    """h: [B, S, F]. Returns h + up_proj(SiLU(down_proj(h))), dtype of h."""
    B, S, F = h.shape
    A = w_down.shape[1]
    M = B * S

    it_h = jnp.dtype(h.dtype).itemsize
    it_w = jnp.dtype(w_down.dtype).itemsize

    # ---- generation-aware VMEM budget --------------------------------------
    try:
        vmem_phys = int(pltpu.get_tpu_info().vmem_capacity_bytes)
    except Exception:
        vmem_phys = 64 << 20              # conservative fallback (v7x per-TC)
    vmem_cap = (vmem_phys * 3) // 4       # ~48 MiB on v7x, ~96 MiB on v5e/v6e
    headroom = 2 << 20

    # Weights/biases: constant index maps (DMA'd once), still double-buffered
    # by default -> budget x2.
    const_bytes = 2 * ((F * A + A * F) * it_w + (A + F) * 4)

    # Per-row VMEM cost: double-buffered input + output tiles, plus in-kernel
    # f32 intermediates (delta tile + the two (tm, A) activation tiles).
    per_row = 2 * 2 * F * it_h + 4 * (F + 2 * A)
    rows_budget = max((vmem_cap - const_bytes - headroom) // per_row, 8)

    # Row tile: multiple of 8, no larger than the (8-aligned) problem size, no
    # larger than the VMEM budget, and (for M > 8) capped at ~M/2 so the
    # "parallel" grid axis has >= 2 blocks for v7x's two TensorCores.
    split_cap = _round_up(_cdiv(M, 2), 8) if M > 8 else _round_up(M, 8)
    tm_eff = min(int(tm), _round_up(M, 8), split_cap, rows_budget)
    tm_eff = max(_round_down(tm_eff, 8), 8)

    grid = (_cdiv(M, tm_eff),)            # cdiv grid over the unpadded array

    h2 = h.reshape(M, F)
    bd2 = b_down.reshape(1, A).astype(jnp.float32)
    bu2 = b_up.reshape(1, F).astype(jnp.float32)

    need = tm_eff * per_row + const_bytes + headroom
    vmem_limit = int(min(max(need, 32 << 20), vmem_cap))

    out = pl.pallas_call(
        adapter_kernel,
        out_shape=jax.ShapeDtypeStruct((M, F), h.dtype),
        grid_spec=pltpu.PrefetchScalarGridSpec(
            num_scalar_prefetch=0,
            grid=grid,
            in_specs=[
                pl.BlockSpec((tm_eff, F), lambda i: (i, 0)),   # h tile
                pl.BlockSpec((F, A), lambda i: (0, 0)),        # W_down (resident)
                pl.BlockSpec((1, A), lambda i: (0, 0)),        # b_down
                pl.BlockSpec((A, F), lambda i: (0, 0)),        # W_up (resident)
                pl.BlockSpec((1, F), lambda i: (0, 0)),        # b_up
            ],
            out_specs=pl.BlockSpec((tm_eff, F), lambda i: (i, 0)),
        ),
        compiler_params=pltpu.CompilerParams(
            dimension_semantics=("parallel",),
            vmem_limit_bytes=vmem_limit,
        ),
    )(h2, w_down, bd2, w_up, bu2)

    return out.reshape(B, S, F)


def adapter_reference(h, w_down, b_down, w_up, b_up):
    hf = h.astype(jnp.float32)
    low = jnp.einsum("bsf,fa->bsa", hf, w_down.astype(jnp.float32)) + b_down
    act = low * jax.nn.sigmoid(low)
    delta = jnp.einsum("bsa,af->bsf", act, w_up.astype(jnp.float32)) + b_up
    return hf + delta


if __name__ == "__main__":
    # Small shapes implied by the module: feature_dim (hidden) = 32,
    # adapter_dim = 8, batch = 2, seq = 8.
    B, S, F, A = 2, 8, 32, 8

    key = jax.random.PRNGKey(0)
    k_h, k_wd, k_bd, k_wu, k_bu = jax.random.split(key, 5)

    # Input hidden states (stand-in for org_module's output h).
    h = jax.random.normal(k_h, (B, S, F), dtype=jnp.float32)

    # NOTE: the module initializes up_proj to zero (forward == identity at t=0);
    # use non-trivial weights here so the matmul/SiLU path is actually tested.
    w_down = 0.05 * jax.random.normal(k_wd, (F, A), dtype=jnp.float32)   # [in, out]
    b_down = 0.10 * jax.random.normal(k_bd, (A,), dtype=jnp.float32)
    w_up = 0.05 * jax.random.normal(k_wu, (A, F), dtype=jnp.float32)     # [in, out]
    b_up = 0.10 * jax.random.normal(k_bu, (F,), dtype=jnp.float32)

    fwd = jax.jit(adapter_forward)

    # f32 I/O path.
    out = jax.block_until_ready(fwd(h, w_down, b_down, w_up, b_up))
    ref = adapter_reference(h, w_down, b_down, w_up, b_up)
    assert out.shape == (B, S, F) and out.dtype == h.dtype
    assert jnp.allclose(out, ref, atol=1e-5, rtol=1e-5), "f32 mismatch vs reference"

    # bf16 I/O path (halves HBM traffic; f32 accumulation inside the kernel).
    out_bf = jax.block_until_ready(
        fwd(h.astype(jnp.bfloat16), w_down.astype(jnp.bfloat16), b_down,
            w_up.astype(jnp.bfloat16), b_up))
    assert jnp.allclose(out_bf.astype(jnp.float32), ref, atol=6e-2, rtol=6e-2), \
        "bf16 mismatch vs reference"

    print("KERNEL_OK")
</pallas_src>

<mosaic_0001>
module attributes {stable_mosaic.version = 11 : i64} {
  func.func @adapter_kernel(%arg0: i32, %arg1: memref<8x32xf32, #tpu.memory_space<vmem>>, %arg2: memref<32x8xf32, #tpu.memory_space<vmem>>, %arg3: memref<1x8xf32, #tpu.memory_space<vmem>>, %arg4: memref<8x32xf32, #tpu.memory_space<vmem>>, %arg5: memref<1x32xf32, #tpu.memory_space<vmem>>, %arg6: memref<8x32xf32, #tpu.memory_space<vmem>>) attributes {dimension_semantics = [#tpu.dimension_semantics<parallel>], iteration_bounds = array<i64: 2>, scalar_prefetch = 0 : i64, scratch_operands = 0 : i64, tpu.core_type = #tpu.core_type<tc>, window_params = [{transform_indices = @transform_0, window_bounds = array<i64: 8, 32>}, {pipeline_mode = #tpu.pipeline_mode<synchronous>, transform_indices = @transform_1, window_bounds = array<i64: 32, 8>}, {pipeline_mode = #tpu.pipeline_mode<synchronous>, transform_indices = @transform_2, window_bounds = array<i64: 1, 8>}, {pipeline_mode = #tpu.pipeline_mode<synchronous>, transform_indices = @transform_3, window_bounds = array<i64: 8, 32>}, {pipeline_mode = #tpu.pipeline_mode<synchronous>, transform_indices = @transform_4, window_bounds = array<i64: 1, 32>}, {transform_indices = @transform_5, window_bounds = array<i64: 8, 32>}]} {
    %c0 = arith.constant 0 : index
    %c0_0 = arith.constant 0 : index
    %0 = vector.load %arg1[%c0, %c0_0] : memref<8x32xf32, #tpu.memory_space<vmem>>, vector<8x32xf32>
    %c0_1 = arith.constant 0 : index
    %c0_2 = arith.constant 0 : index
    %1 = vector.load %arg2[%c0_1, %c0_2] : memref<32x8xf32, #tpu.memory_space<vmem>>, vector<32x8xf32>
    %cst = arith.constant dense<0.000000e+00> : vector<8x8xf32>
    %2 = tpu.matmul %0, %1, %cst {dimension_numbers = #tpu.dot_dimension_numbers<[1], [0], [0], [1], [0, 0, 1, 1], [], []>} : vector<8x32xf32>, vector<32x8xf32>, vector<8x8xf32> -> vector<8x8xf32>
    %c0_3 = arith.constant 0 : index
    %c0_4 = arith.constant 0 : index
    %3 = vector.load %arg3[%c0_3, %c0_4] : memref<1x8xf32, #tpu.memory_space<vmem>>, vector<1x8xf32>
    %4 = vector.broadcast %3 : vector<1x8xf32> to vector<8x8xf32>
    %5 = arith.addf %2, %4 : vector<8x8xf32>
    %6 = arith.negf %5 : vector<8x8xf32>
    %7 = math.exp %6 : vector<8x8xf32>
    %cst_5 = arith.constant 1.000000e+00 : f32
    %8 = vector.broadcast %cst_5 : f32 to vector<8x8xf32>
    %9 = arith.addf %8, %7 : vector<8x8xf32>
    %10 = arith.divf %8, %9 : vector<8x8xf32>
    %11 = arith.mulf %5, %10 : vector<8x8xf32>
    %c0_6 = arith.constant 0 : index
    %c0_7 = arith.constant 0 : index
    %12 = vector.load %arg4[%c0_6, %c0_7] : memref<8x32xf32, #tpu.memory_space<vmem>>, vector<8x32xf32>
    %cst_8 = arith.constant dense<0.000000e+00> : vector<8x32xf32>
    %13 = tpu.matmul %11, %12, %cst_8 {dimension_numbers = #tpu.dot_dimension_numbers<[1], [0], [0], [1], [0, 0, 1, 1], [], []>} : vector<8x8xf32>, vector<8x32xf32>, vector<8x32xf32> -> vector<8x32xf32>
    %c0_9 = arith.constant 0 : index
    %c0_10 = arith.constant 0 : index
    %14 = vector.load %arg5[%c0_9, %c0_10] : memref<1x32xf32, #tpu.memory_space<vmem>>, vector<1x32xf32>
    %15 = vector.broadcast %14 : vector<1x32xf32> to vector<8x32xf32>
    %16 = arith.addf %13, %15 : vector<8x32xf32>
    %c0_11 = arith.constant 0 : index
    %c0_12 = arith.constant 0 : index
    %17 = vector.load %arg1[%c0_11, %c0_12] : memref<8x32xf32, #tpu.memory_space<vmem>>, vector<8x32xf32>
    %18 = arith.addf %17, %16 : vector<8x32xf32>
    %c0_13 = arith.constant 0 : index
    %c0_14 = arith.constant 0 : index
    %19 = vector.load %arg6[%c0_13, %c0_14] : memref<8x32xf32, #tpu.memory_space<vmem>>, vector<8x32xf32>
    tpu.vector_store %arg6[%c0_13, %c0_14], %18 {strides = array<i32>} : memref<8x32xf32, #tpu.memory_space<vmem>>, vector<8x32xf32>,
    return
  }
  func.func @transform_0(%arg0: i32) -> (i32, i32) {
    %c0_i32 = arith.constant 0 : i32
    %c0_i32_0 = arith.constant 0 : i32
    return %arg0, %c0_i32 : i32, i32
  }
  func.func @transform_1(%arg0: i32) -> (i32, i32) {
    %c0_i32 = arith.constant 0 : i32
    %c0_i32_0 = arith.constant 0 : i32
    %c0_i32_1 = arith.constant 0 : i32
    return %c0_i32, %c0_i32_0 : i32, i32
  }
  func.func @transform_2(%arg0: i32) -> (i32, i32) {
    %c0_i32 = arith.constant 0 : i32
    %c0_i32_0 = arith.constant 0 : i32
    %c0_i32_1 = arith.constant 0 : i32
    return %c0_i32, %c0_i32_0 : i32, i32
  }
  func.func @transform_3(%arg0: i32) -> (i32, i32) {
    %c0_i32 = arith.constant 0 : i32
    %c0_i32_0 = arith.constant 0 : i32
    %c0_i32_1 = arith.constant 0 : i32
    return %c0_i32, %c0_i32_0 : i32, i32
  }
  func.func @transform_4(%arg0: i32) -> (i32, i32) {
    %c0_i32 = arith.constant 0 : i32
    %c0_i32_0 = arith.constant 0 : i32
    %c0_i32_1 = arith.constant 0 : i32
    return %c0_i32, %c0_i32_0 : i32, i32
  }
  func.func @transform_5(%arg0: i32) -> (i32, i32) {
    %c0_i32 = arith.constant 0 : i32
    %c0_i32_0 = arith.constant 0 : i32
    return %arg0, %c0_i32 : i32, i32
  }
}

</mosaic_0001>

<llo_original>
// kernel: adapter_forward.1
$region0: #{adapter_forward.1}
  #allocation0 [shape = 'u32[]', space=smem, size = 0x4, offset = 0x4, fixed_abs, tag = 'smem constant byte address 0x4 - core index']
  #allocation1 [shape = 'u32[144,128]{1,0:T(1,128)}', space=vmem, size = 0x12000, scoped, tag = 'internal scratch']
  %s0 = inlined_call_operand.vmem [shape: f32[16,32], index: 0, kind: input, shape index: {}]
  %s1 = inlined_call_operand.vmem [shape: f32[32,8], index: 1, kind: input, shape index: {}]
  %s2 = inlined_call_operand.vmem [shape: f32[1,8], index: 2, kind: input, shape index: {}]
  %s3 = inlined_call_operand.vmem [shape: f32[8,32], index: 3, kind: input, shape index: {}]
  %s4 = inlined_call_operand.vmem [shape: f32[1,32], index: 4, kind: input, shape index: {}]
  %s5 = inlined_call_operand.hbm [shape: f32[16,32], index: 5, kind: output, shape index: {}]
  %s6 = sld [smem:[#allocation0]]
  $region53: #{adapter_forward.1} parent=0
    _
  %s8 = ssub.s32 1, %s6
  %s9 = scalar_select 0, %s8, %s6
  $region1: #{adapter_forward.1} parent=0
    #allocation2 [shape = 'u8[8192]{0}', space=vmem, size = 0x2000, scoped, tag = 'output window, operand 0']
    #allocation3 [shape = 's32[2]{0}', space=sflag, size = 0x8, scoped, tag = 'scoped memory for adapter_forward.1']
    %10 = vsyncpa [#allocation3], 0
    %s11 = scalar_lea.sflag [#allocation3], 1
    %12 = vsyncpa %s11, 0
    loop: start=0, step=1, limit=4
    $region2: #{adapter_forward.1} parent=1 // loop_pre_header
      _
    $region3: #{adapter_forward.1} parent=1 // loop_header
      %s14 = sphi 0, %s18
      %p15 = scmp.ge.s32.totalorder %s14, 4
      %s24 = sphi 0, %s26
      %s27 = sphi 0, %s24
      %s28 = sphi 0, %s27
      %s44 = sphi 0, %s28
      %s48 = sphi 0, %s48
      %s50 = sphi 0, %s48
      %s51 = sphi 0, %s50
      %s65 = sphi 0, %s51
      %s69 = sphi 0, %s69
      %s71 = sphi 0, %s69
      %s72 = sphi 0, %s71
      %s86 = sphi 0, %s72
      %s90 = sphi 0, %s90
      %s92 = sphi 0, %s90
      %s93 = sphi 0, %s92
      %s107 = sphi 0, %s93
      %s111 = sphi 0, %s111
      %s113 = sphi 0, %s111
      %s114 = sphi 0, %s113
      %s128 = sphi 0, %s114
      %s134 = sphi 0, %s136
      %s137 = sphi 0, %s134
      %s138 = sphi 0, %s137
      %s154 = sphi 0, %s138
    $region4: #{adapter_forward.1} parent=1 // loop_header_branch
      %17 = sbr.rel (%p15) target = $region8
    $region5: #{adapter_forward.1} parent=1 // loop_body
      %s19 = ssub.s32 %s14, 1
      %s20 = ssub.s32 %s14, 2
      %s21 = sadd.s32 %s14, 1
      %s22 = ssub.s32 %s14, %s21
      %p23 = scmp.eq.s32.totalorder %s22, 0
      %s25 = sadd.s32 %s24, 1
      %s26 = scalar_select %p23, %s24, %s25
      %p29 = pneg %p23
      %p30 = scmp.eq.s32.totalorder %s14, 1
      %p31 = por %p29, %p30
      %p32 = scmp.ne.s32.totalorder %s24, %s27
      %p33 = scmp.eq.s32.totalorder %s14, 0
      %p34 = por %p32, %p33
      %p35 = scmp.ne.s32.totalorder %s24, %s27
      %p36 = scmp.eq.s32.totalorder %s19, 1
      %p37 = por %p35, %p36
      %p38 = scmp.ne.s32.totalorder %s27, %s28
      %p39 = scmp.eq.s32.totalorder %s19, 0
      %p40 = por %p38, %p39
      %p41 = scmp.ne.s32.totalorder %s27, %s28
      %p42 = scmp.eq.s32.totalorder %s20, 1
      %p43 = por %p41, %p42
      %p45 = scmp.ne.s32.totalorder %s28, %s44
      %p46 = scmp.eq.s32.totalorder %s20, 0
      %p47 = por %p45, %p46
      %s49 = sadd.s32 %s48, 1
      %p52 = scmp.eq.s32.totalorder %s14, 1
      %p53 = scmp.ne.s32.totalorder %s48, %s50
      %p54 = scmp.eq.s32.totalorder %s14, 0
      %p55 = por %p53, %p54
      %p56 = scmp.ne.s32.totalorder %s48, %s50
      %p57 = scmp.eq.s32.totalorder %s19, 1
      %p58 = por %p56, %p57
      %p59 = scmp.ne.s32.totalorder %s50, %s51
      %p60 = scmp.eq.s32.totalorder %s19, 0
      %p61 = por %p59, %p60
      %p62 = scmp.ne.s32.totalorder %s50, %s51
      %p63 = scmp.eq.s32.totalorder %s20, 1
      %p64 = por %p62, %p63
      %p66 = scmp.ne.s32.totalorder %s51, %s65
      %p67 = scmp.eq.s32.totalorder %s20, 0
      %p68 = por %p66, %p67
      %s70 = sadd.s32 %s69, 1
      %p73 = scmp.eq.s32.totalorder %s14, 1
      %p74 = scmp.ne.s32.totalorder %s69, %s71
      %p75 = scmp.eq.s32.totalorder %s14, 0
      %p76 = por %p74, %p75
      %p77 = scmp.ne.s32.totalorder %s69, %s71
      %p78 = scmp.eq.s32.totalorder %s19, 1
      %p79 = por %p77, %p78
      %p80 = scmp.ne.s32.totalorder %s71, %s72
      %p81 = scmp.eq.s32.totalorder %s19, 0
      %p82 = por %p80, %p81
      %p83 = scmp.ne.s32.totalorder %s71, %s72
      %p84 = scmp.eq.s32.totalorder %s20, 1
      %p85 = por %p83, %p84
      %p87 = scmp.ne.s32.totalorder %s72, %s86
      %p88 = scmp.eq.s32.totalorder %s20, 0
      %p89 = por %p87, %p88
      %s91 = sadd.s32 %s90, 1
      %p94 = scmp.eq.s32.totalorder %s14, 1
      %p95 = scmp.ne.s32.totalorder %s90, %s92
      %p96 = scmp.eq.s32.totalorder %s14, 0
      %p97 = por %p95, %p96
      %p98 = scmp.ne.s32.totalorder %s90, %s92
      %p99 = scmp.eq.s32.totalorder %s19, 1
      %p100 = por %p98, %p99
      %p101 = scmp.ne.s32.totalorder %s92, %s93
      %p102 = scmp.eq.s32.totalorder %s19, 0
      %p103 = por %p101, %p102
      %p104 = scmp.ne.s32.totalorder %s92, %s93
      %p105 = scmp.eq.s32.totalorder %s20, 1
      %p106 = por %p104, %p105
      %p108 = scmp.ne.s32.totalorder %s93, %s107
      %p109 = scmp.eq.s32.totalorder %s20, 0
      %p110 = por %p108, %p109
      %s112 = sadd.s32 %s111, 1
      %p115 = scmp.eq.s32.totalorder %s14, 1
      %p116 = scmp.ne.s32.totalorder %s111, %s113
      %p117 = scmp.eq.s32.totalorder %s14, 0
      %p118 = por %p116, %p117
      %p119 = scmp.ne.s32.totalorder %s111, %s113
      %p120 = scmp.eq.s32.totalorder %s19, 1
      %p121 = por %p119, %p120
      %p122 = scmp.ne.s32.totalorder %s113, %s114
      %p123 = scmp.eq.s32.totalorder %s19, 0
      %p124 = por %p122, %p123
      %p125 = scmp.ne.s32.totalorder %s113, %s114
      %p126 = scmp.eq.s32.totalorder %s20, 1
      %p127 = por %p125, %p126
      %p129 = scmp.ne.s32.totalorder %s114, %s128
      %p130 = scmp.eq.s32.totalorder %s20, 0
      %p131 = por %p129, %p130
      %s132 = ssub.s32 %s14, %s21
      %p133 = scmp.eq.s32.totalorder %s132, 0
      %s135 = sadd.s32 %s134, 1
      %s136 = scalar_select %p133, %s134, %s135
      %p139 = pneg %p133
      %p140 = scmp.eq.s32.totalorder %s14, 1
      %p141 = por %p139, %p140
      %p142 = scmp.ne.s32.totalorder %s134, %s137
      %p143 = scmp.eq.s32.totalorder %s14, 0
      %p144 = por %p142, %p143
      %p145 = scmp.ne.s32.totalorder %s134, %s137
      %p146 = scmp.eq.s32.totalorder %s19, 1
      %p147 = por %p145, %p146
      %p148 = scmp.ne.s32.totalorder %s137, %s138
      %p149 = scmp.eq.s32.totalorder %s19, 0
      %p150 = por %p148, %p149
      %p151 = scmp.ne.s32.totalorder %s137, %s138
      %p152 = scmp.eq.s32.totalorder %s20, 1
      %p153 = por %p151, %p152
      %p155 = scmp.ne.s32.totalorder %s138, %s154
      %p156 = scmp.eq.s32.totalorder %s20, 0
      %p157 = por %p155, %p156
      %p158 = scmp.le.s32.totalorder 1, %s14
      %p159 = scmp.lt.s32.totalorder %s14, 3
      %p160 = pnand %p158, %p159
      %p161 = pneg %p160
      // Predicated region
      $region9: #{adapter_forward.1} parent=5 // pred_check
        _
      $region10: #{adapter_forward.1} parent=5 // pred_check_branch
        %163 = sbr.rel (%p160) target = $region12
      $region11: #{adapter_forward.1} parent=5 // pred_region
        %s164 = ssub.s32 %s14, 1
        // Predicated region
        $region13: #{adapter_forward.1} parent=11 // pred_check
          %p165 = pneg %p61
        $region14: #{adapter_forward.1} parent=11 // pred_check_branch
          %167 = sbr.rel (%p165) target = $region16
        $region15: #{adapter_forward.1} parent=11 // pred_region
          _
        $region16: #{adapter_forward.1} parent=11 // pred_fallthru
          _
        // Predicated region
        $region17: #{adapter_forward.1} parent=11 // pred_check
          %p168 = pneg %p82
        $region18: #{adapter_forward.1} parent=11 // pred_check_branch
          %170 = sbr.rel (%p168) target = $region20
        $region19: #{adapter_forward.1} parent=11 // pred_region
          _
        $region20: #{adapter_forward.1} parent=11 // pred_fallthru
          _
        // Predicated region
        $region21: #{adapter_forward.1} parent=11 // pred_check
          %p171 = pneg %p103
        $region22: #{adapter_forward.1} parent=11 // pred_check_branch
          %173 = sbr.rel (%p171) target = $region24
        $region23: #{adapter_forward.1} parent=11 // pred_region
          _
        $region24: #{adapter_forward.1} parent=11 // pred_fallthru
          _
        // Predicated region
        $region25: #{adapter_forward.1} parent=11 // pred_check
          %p174 = pneg %p124
        $region26: #{adapter_forward.1} parent=11 // pred_check_branch
          %176 = sbr.rel (%p174) target = $region28
        $region27: #{adapter_forward.1} parent=11 // pred_region
          _
        $region28: #{adapter_forward.1} parent=11 // pred_fallthru
          _
      $region12: #{adapter_forward.1} parent=5 // pred_fallthru
        _
      %p177 = scmp.lt.s32.totalorder %s14, 2
      // Predicated region
      $region29: #{adapter_forward.1} parent=5 // pred_check
        %p178 = pneg %p177
      $region30: #{adapter_forward.1} parent=5 // pred_check_branch
        %180 = sbr.rel (%p178) target = $region32
      $region31: #{adapter_forward.1} parent=5 // pred_region
        // Predicated region
        $region33: #{adapter_forward.1} parent=31 // pred_check
          %p181 = pneg %p34
        $region34: #{adapter_forward.1} parent=31 // pred_check_branch
          %183 = sbr.rel (%p181) target = $region36
        $region35: #{adapter_forward.1} parent=31 // pred_region
          %p184 = scmp.lt.s32.totalorder %s14, 1
          %s185 = scalar_select %p184, %s14, 1
          %s186 = smul.addr %s185, 8
          %s187 = scalar_lea.vmem %s0, %s186
        $region36: #{adapter_forward.1} parent=31 // pred_fallthru
          _
      $region32: #{adapter_forward.1} parent=5 // pred_fallthru
        _
      %p188 = scmp.le.s32.totalorder 1, %s14
      %p189 = scmp.lt.s32.totalorder %s14, 3
      %p190 = pnand %p188, %p189
      %p191 = pneg %p190
      // Predicated region
      $region37: #{adapter_forward.1} parent=5 // pred_check
        _
      $region38: #{adapter_forward.1} parent=5 // pred_check_branch
        %193 = sbr.rel (%p190) target = $region40
      $region39: #{adapter_forward.1} parent=5 // pred_region
        %s194 = ssub.s32 %s14, 1
        %p195 = scmp.lt.s32.totalorder %s19, 1
        %s196 = scalar_select %p195, %s19, 1
        %s197 = smul.addr %s196, 8
        %s198 = scalar_lea.vmem %s0, %s197
        %p199 = pneg %p40
        %p200 = pneg %p37
        %p201 = pneg %p61
        %p202 = pneg %p58
        %p203 = pneg %p82
        %p204 = pneg %p79
        %p205 = pneg %p103
        %p206 = pneg %p100
        %p207 = pneg %p124
        %p208 = pneg %p121
        %p209 = pneg %p150
        %p210 = pneg %p147
        %s211 = sand.u32 %s137, 1
        %s212 = scalar_lea.sflag [#allocation3], %s211
        %s213 = sand.u32 %s137, 1
        %s214 = smul.addr %s213, 8
        %s215 = scalar_lea.vmem [#allocation2], %s214
        %p216 = scmp.lt.s32.totalorder %s19, 1
        %s217 = scalar_select %p216, %s19, 1
        %s218 = smul.addr %s217, 8
        %s219 = scalar_lea.vmem %s0, %s218
        %v220 = vld [vmem:[%s219] sm:$0xff]
        %v221 = vld [vmem:[%s1] sm:$0xff]
        %v222 = vld [vmem:[%s1 + $0x8] sm:$0xff]
        %v223 = vld [vmem:[%s1 + $0x10] sm:$0xff]
        %v224 = vld [vmem:[%s1 + $0x18] sm:$0xff]
        %v225 = vld [vmem:[%s2] sm:$0x1]
        %v227 = vlaneseq
        %v228 = vshrl.u32 %v227, 7
        %v229 = vsub.s32 0, %v228
        %v230 = vrot.slane %v225, %v229
        %vm232 = vcmask 261120
        %v234 = vsel %vm232, %v220, 0
        %236 = vmatprep.subr.mxu0 0.0
        %237 = vmatpush1.msra.mxu0 0.0
        %238 = vmatprep.subr.mxu0 0.0
        %239 = vmatpush1.msra.mxu0 0.0
        %240 = vmatprep.subr.mxu0 0.0
        %241 = vmatpush1.msra.mxu0 0.0
        %242 = vmatprep.subr.mxu0 0.0
        %243 = vmatpush1.msra.mxu0 0.0
        %244 = vmatprep.subr.mxu0 0.0
        %245 = vmatpush1.msra.mxu0 0.0
        %246 = vmatprep.subr.mxu0 0.0
        %247 = vmatpush1.msra.mxu0 0.0
        %248 = vmatprep.subr.mxu0 0.0
        %249 = vmatpush1.msra.mxu0 0.0
        %250 = vmatprep.subr.mxu0 0.0
        %251 = vmatpush1.msra.mxu0 0.0
        %252 = vmatprep.subr.mxu0 0.0
        %253 = vmatpush1.msra.mxu0 0.0
        %254 = vmatprep.subr.mxu0 0.0
        %255 = vmatpush1.msra.mxu0 0.0
        %256 = vmatprep.subr.mxu0 0.0
        %257 = vmatpush1.msra.mxu0 0.0
        %258 = vmatprep.subr.mxu0 0.0
        %259 = vmatpush1.msra.mxu0 0.0
        %260 = vmatprep.subr.mxu0 0.0
        %261 = vmatpush1.msra.mxu0 %v224
        %262 = vmatprep.subr.mxu0 0.0
        %263 = vmatpush1.msra.mxu0 %v223
        %264 = vmatprep.subr.mxu0 0.0
        %265 = vmatpush1.msra.mxu0 %v222
        %266 = vmatprep.subr.mxu0 0.0
        %267 = vmatpush1.msra.mxu0 %v221
        %268 = vmatprep.subr.mxu0 0.0
        %269 = vmatpush2.msra.mxu0 0.0
        %270 = vmatprep.subr.mxu0 0.0
        %271 = vmatpush2.msra.mxu0 0.0
        %272 = vmatprep.subr.mxu0 0.0
        %273 = vmatpush2.msra.mxu0 0.0
        %274 = vmatprep.subr.mxu0 0.0
        %275 = vmatpush2.msra.mxu0 0.0
        %276 = vmatprep.subr.mxu0 0.0
        %277 = vmatpush2.msra.mxu0 0.0
        %278 = vmatprep.subr.mxu0 0.0
        %279 = vmatpush2.msra.mxu0 0.0
        %280 = vmatprep.subr.mxu0 0.0
        %281 = vmatpush2.msra.mxu0 0.0
        %282 = vmatprep.subr.mxu0 0.0
        %283 = vmatpush2.msra.mxu0 0.0
        %284 = vmatprep.subr.mxu0 0.0
        %285 = vmatpush2.msra.mxu0 0.0
        %286 = vmatprep.subr.mxu0 0.0
        %287 = vmatpush2.msra.mxu0 0.0
        %288 = vmatprep.subr.mxu0 0.0
        %289 = vmatpush2.msra.mxu0 0.0
        %290 = vmatprep.subr.mxu0 0.0
        %291 = vmatpush2.msra.mxu0 0.0
        %292 = vmatprep.subr.mxu0 0.0
        %293 = vmatpush2.msra.mxu0 0.0
        %294 = vmatprep.subr.mxu0 0.0
        %295 = vmatpush2.msra.mxu0 0.0
        %296 = vmatprep.subr.mxu0 0.0
        %297 = vmatpush2.msra.mxu0 0.0
        %298 = vmatprep.subr.mxu0 0.0
        %299 = vmatpush2.msra.mxu0 0.0
        %300 = vmatprep.mubr.f32.mxu0 0.0
        %301 = vmatmul.mubr.f32.gmra.mxu0 %v234
        %v302 = vpop.f32.mrf.mxu0
        %v303 = vadd.f32 %v230, %v302
        %v304 = vpop.f32.mrf.mxu0
        %305 = vdwg.mxu0
        %v306 = vxor.u32 %v303, 2147483648
        %v307 = vmul.f32 %v306, 1.442695
        %v308 = vpow.pop %v307
        %v309 = vadd.f32 %v308, 1.0
        %v310 = vrcp.pop %v309
        %v311 = vmul.f32 1.0, %v310
        %v312 = vmul.f32 %v303, %v311
        %v313 = vld [vmem:[%s3] sm:$0xff]
        %v314 = vld [vmem:[%s4] sm:$0x1]
        %v316 = vlaneseq
        %v317 = vshrl.u32 %v316, 7
        %v318 = vsub.s32 0, %v317
        %v319 = vrot.slane %v314, %v318
        %vm321 = vcmask 64512
        %v323 = vsel %vm321, %v312, 0
        %325 = vmatprep.subr.mxu0 0.0
        %326 = vmatpush1.msra.mxu0 0.0
        %327 = vmatprep.subr.mxu0 0.0
        %328 = vmatpush1.msra.mxu0 0.0
        %329 = vmatprep.subr.mxu0 0.0
        %330 = vmatpush1.msra.mxu0 0.0
        %331 = vmatprep.subr.mxu0 0.0
        %332 = vmatpush1.msra.mxu0 0.0
        %333 = vmatprep.subr.mxu0 0.0
        %334 = vmatpush1.msra.mxu0 0.0
        %335 = vmatprep.subr.mxu0 0.0
        %336 = vmatpush1.msra.mxu0 0.0
        %337 = vmatprep.subr.mxu0 0.0
        %338 = vmatpush1.msra.mxu0 0.0
        %339 = vmatprep.subr.mxu0 0.0
        %340 = vmatpush1.msra.mxu0 0.0
        %341 = vmatprep.subr.mxu0 0.0
        %342 = vmatpush1.msra.mxu0 0.0
        %343 = vmatprep.subr.mxu0 0.0
        %344 = vmatpush1.msra.mxu0 0.0
        %345 = vmatprep.subr.mxu0 0.0
        %346 = vmatpush1.msra.mxu0 0.0
        %347 = vmatprep.subr.mxu0 0.0
        %348 = vmatpush1.msra.mxu0 0.0
        %349 = vmatprep.subr.mxu0 0.0
        %350 = vmatpush1.msra.mxu0 0.0
        %351 = vmatprep.subr.mxu0 0.0
        %352 = vmatpush1.msra.mxu0 0.0
        %353 = vmatprep.subr.mxu0 0.0
        %354 = vmatpush1.msra.mxu0 0.0
        %355 = vmatprep.subr.mxu0 0.0
        %356 = vmatpush1.msra.mxu0 %v313
        %357 = vmatprep.subr.mxu0 0.0
        %358 = vmatpush2.msra.mxu0 0.0
        %359 = vmatprep.subr.mxu0 0.0
        %360 = vmatpush2.msra.mxu0 0.0
        %361 = vmatprep.subr.mxu0 0.0
        %362 = vmatpush2.msra.mxu0 0.0
        %363 = vmatprep.subr.mxu0 0.0
        %364 = vmatpush2.msra.mxu0 0.0
        %365 = vmatprep.subr.mxu0 0.0
        %366 = vmatpush2.msra.mxu0 0.0
        %367 = vmatprep.subr.mxu0 0.0
        %368 = vmatpush2.msra.mxu0 0.0
        %369 = vmatprep.subr.mxu0 0.0
        %370 = vmatpush2.msra.mxu0 0.0
        %371 = vmatprep.subr.mxu0 0.0
        %372 = vmatpush2.msra.mxu0 0.0
        %373 = vmatprep.subr.mxu0 0.0
        %374 = vmatpush2.msra.mxu0 0.0
        %375 = vmatprep.subr.mxu0 0.0
        %376 = vmatpush2.msra.mxu0 0.0
        %377 = vmatprep.subr.mxu0 0.0
        %378 = vmatpush2.msra.mxu0 0.0
        %379 = vmatprep.subr.mxu0 0.0
        %380 = vmatpush2.msra.mxu0 0.0
        %381 = vmatprep.subr.mxu0 0.0
        %382 = vmatpush2.msra.mxu0 0.0
        %383 = vmatprep.subr.mxu0 0.0
        %384 = vmatpush2.msra.mxu0 0.0
        %385 = vmatprep.subr.mxu0 0.0
        %386 = vmatpush2.msra.mxu0 0.0
        %387 = vmatprep.subr.mxu0 0.0
        %388 = vmatpush2.msra.mxu0 0.0
        %389 = vmatprep.mubr.f32.mxu0 0.0
        %390 = vmatmul.mubr.f32.gmra.mxu0 %v323
        %v391 = vpop.f32.mrf.mxu0
        %v392 = vadd.f32 %v319, %v391
        %v393 = vpop.f32.mrf.mxu0
        %394 = vdwg.mxu0
        %v395 = vadd.f32 %v220, %v392
        %396 = vst.msk [vmem:[%s215] sm:$0xff] %vm232, %v395
        %s397 = sand.u32 %s137, 1
        %s398 = scalar_lea.sflag [#allocation3], %s397
        %s399 = sand.u32 %s137, 1
        %s400 = smul.addr %s399, 8
        %s401 = scalar_lea.vmem [#allocation2], %s400
        // Predicated region
        $region41: #{adapter_forward.1} parent=39 // pred_check
          %p402 = pneg %p147
        $region42: #{adapter_forward.1} parent=39 // pred_check_branch
          %404 = sbr.rel (%p402) target = $region44
        $region43: #{adapter_forward.1} parent=39 // pred_region
          %s406 = ssub.s32 128, 128
          %407 = vsyncadd %s398, %s406
          %s408 = smul.addr %s19, 128
          %s409 = scalar_lea.hbm %s5, %s408
          %s411 = sshll.u32 %s401, 4
          %s412 = int_to_ptr.vmem [resolvable:$true] %s411
          %414 = dma.vmem_to_hbm [thread:$0]  %s412, 128, %s409, %s398
        $region44: #{adapter_forward.1} parent=39 // pred_fallthru
          _
      $region40: #{adapter_forward.1} parent=5 // pred_fallthru
        _
      %p415 = scmp.le.s32.totalorder 2, %s14
      // Predicated region
      $region45: #{adapter_forward.1} parent=5 // pred_check
        %p416 = pneg %p415
      $region46: #{adapter_forward.1} parent=5 // pred_check_branch
        %418 = sbr.rel (%p416) target = $region48
      $region47: #{adapter_forward.1} parent=5 // pred_region
        %s419 = ssub.s32 %s14, 2
        // Predicated region
        $region49: #{adapter_forward.1} parent=47 // pred_check
          %p420 = pneg %p153
        $region50: #{adapter_forward.1} parent=47 // pred_check_branch
          %422 = sbr.rel (%p420) target = $region52
        $region51: #{adapter_forward.1} parent=47 // pred_region
          %s423 = sand.u32 %s138, 1
          %s424 = scalar_lea.sflag [#allocation3], %s423
          %s425 = sand.u32 %s138, 1
          %s426 = smul.addr %s425, 8
          %s427 = scalar_lea.vmem [#allocation2], %s426
          %428 = dma.done %s424, 128
        $region52: #{adapter_forward.1} parent=47 // pred_fallthru
          _
      $region48: #{adapter_forward.1} parent=5 // pred_fallthru
        _
    $region6: #{adapter_forward.1} parent=1 // loop_footer
      %s18 = sadd.s32 1, %s14
    $region7: #{adapter_forward.1} parent=1 // loop_footer_branch
      %13 = sbr.rel target = $region3
    $region8: #{adapter_forward.1} parent=1 // loop_exit
      _
    %429 = vsyncpa [#allocation3], 1
    %s430 = scalar_lea.sflag [#allocation3], 1
    %431 = vsyncpa %s430, 1

</llo_original>
